<compile_context>
chip_gen: v5e
topology: v5e:2x2
jax: 0.10.0
libtpu: 0.0.40
codegen_flags: <defaults>
</compile_context>

<pallas_src>
import functools
import math

import jax
import jax.numpy as jnp
from jax import lax
from jax.experimental import pallas as pl
from jax.experimental.pallas import tpu as pltpu

_NEG_BIG = -1e30                  # finite mask fill: avoids exp(-inf - -inf) NaNs when tiling
_VMEM_LIMIT = 64 * 1024 * 1024    # v7x-safe (64 MiB physical); raises default scoped limit on v5e/v6e


def _pick_tile(dim, preferred, align=128):
    """Largest multiple of `align` that divides `dim` and is <= `preferred`.

    Falls back to the full dimension (always a legal block) only when no
    aligned divisor exists (small / odd dims become a single block).
    """
    if dim <= preferred:
        return dim
    t = (preferred // align) * align
    while t >= align:
        if dim % t == 0:
            return t
        t -= align
    return dim


# --------------------------------------------------------------------------
# 1 & 3) Tiled matmul + bias:  (M, K) @ (K, N) + (1, N)
# --------------------------------------------------------------------------
def _matmul_bias_kernel(x_ref, w_ref, b_ref, o_ref, acc_ref):
    @pl.when(pl.program_id(2) == 0)
    def _init():
        acc_ref[...] = jnp.zeros_like(acc_ref)

    acc_ref[...] += jnp.dot(x_ref[...], w_ref[...],
                            preferred_element_type=jnp.float32)

    @pl.when(pl.program_id(2) == pl.num_programs(2) - 1)
    def _store():
        o_ref[...] = (acc_ref[...] + b_ref[...]).astype(o_ref.dtype)


def _matmul_bias(x2d, w, b, out_dtype, *, tm=512, tn=512, tk=512):
    M, K = x2d.shape
    Kw, N = w.shape
    assert K == Kw
    tm = _pick_tile(M, tm)
    tn = _pick_tile(N, tn)
    tk = _pick_tile(K, tk)
    grid = (M // tm, N // tn, K // tk)
    return pl.pallas_call(
        _matmul_bias_kernel,
        out_shape=jax.ShapeDtypeStruct((M, N), out_dtype),
        grid_spec=pltpu.PrefetchScalarGridSpec(
            num_scalar_prefetch=0,
            grid=grid,
            in_specs=[
                pl.BlockSpec((tm, tk), lambda i, j, k: (i, k)),
                pl.BlockSpec((tk, tn), lambda i, j, k: (k, j)),
                pl.BlockSpec((1, tn), lambda i, j, k: (0, j)),
            ],
            out_specs=pl.BlockSpec((tm, tn), lambda i, j, k: (i, j)),
            scratch_shapes=[pltpu.VMEM((tm, tn), jnp.float32)],
        ),
        compiler_params=pltpu.CompilerParams(
            dimension_semantics=("parallel", "parallel", "arbitrary"),
            vmem_limit_bytes=_VMEM_LIMIT),
    )(x2d, w, b)


# --------------------------------------------------------------------------
# 2) Flash-style causal attention, consuming the fused QKV buffer directly.
#    qkv5: (B, T, 3, H, hd)  ->  ctx: (B, T, H*hd)   (lane-dense output)
#    (the 1/sqrt(hd) scale is already folded into the Q weight columns)
# --------------------------------------------------------------------------
def _flash_attn_kernel(q_ref, k_ref, v_ref, o_ref, m_ref, l_ref, acc_ref,
                       *, tq, tkv, num_heads, head_dim, approx_recip):
    # q_ref: (tq, H, hd);  k_ref / v_ref: (tkv, H, hd);  o_ref: (tq, H*hd)
    ki = pl.program_id(2)
    nk = pl.num_programs(2)

    @pl.when(ki == 0)
    def _init():
        m_ref[...] = jnp.full_like(m_ref, _NEG_BIG)
        l_ref[...] = jnp.zeros_like(l_ref)
        acc_ref[...] = jnp.zeros_like(acc_ref)

    q_start = pl.program_id(1) * tq
    k_start = ki * tkv

    # Skip kv tiles entirely above the causal diagonal (their DMA is also
    # skipped via the clamped index_map in _flash_attention).
    @pl.when(k_start <= q_start + tq - 1)
    def _compute():
        row = q_start + lax.broadcasted_iota(jnp.int32, (tq, tkv), 0)
        col = k_start + lax.broadcasted_iota(jnp.int32, (tq, tkv), 1)
        causal = col <= row

        # Static unroll over heads: plain 2-D MXU matmuls + per-head online
        # softmax state living in lane-dense scratch columns.
        for h in range(num_heads):
            cs = slice(h * head_dim, (h + 1) * head_dim)
            q_h = q_ref[:, h, :]                                     # (tq, hd)
            k_h = k_ref[:, h, :]                                     # (tkv, hd)
            v_h = v_ref[:, h, :]                                     # (tkv, hd)

            s = lax.dot_general(q_h, k_h, (((1,), (1,)), ((), ())),
                                preferred_element_type=jnp.float32)  # (tq, tkv)
            s = jnp.where(causal, s, _NEG_BIG)

            m_prev = m_ref[:, h:h + 1]                               # (tq, 1)
            m_new = jnp.maximum(m_prev, jnp.max(s, axis=-1, keepdims=True))
            alpha = jnp.exp(m_prev - m_new)
            p = jnp.exp(s - m_new)
            l_ref[:, h:h + 1] = alpha * l_ref[:, h:h + 1] + jnp.sum(
                p, axis=-1, keepdims=True)
            pv = jnp.dot(p.astype(v_h.dtype), v_h,
                         preferred_element_type=jnp.float32)         # (tq, hd)
            acc_ref[:, cs] = alpha * acc_ref[:, cs] + pv
            m_ref[:, h:h + 1] = m_new

    @pl.when(ki == nk - 1)
    def _finalize():
        inv_l = pl.reciprocal(l_ref[...], approx=approx_recip)       # (tq, H)
        for h in range(num_heads):
            cs = slice(h * head_dim, (h + 1) * head_dim)
            o_ref[:, cs] = (acc_ref[:, cs] * inv_l[:, h:h + 1]).astype(o_ref.dtype)


def _flash_attention(qkv5, *, num_heads, head_dim, tq=256, tkv=256,
                     approx_recip=True):
    """qkv5: (B, T, 3, H, hd), the free row-major reshape of the QKV matmul output."""
    B, T, three, H, hd = qkv5.shape
    assert three == 3 and H == num_heads and hd == head_dim
    d_out = H * hd
    tq = _pick_tile(T, tq)
    tkv = _pick_tile(T, tkv)
    grid = (B, T // tq, T // tkv)

    def q_map(b, qi, ki):
        return (b, qi, 0, 0, 0)

    def kv_map(plane):
        def index_map(b, qi, ki):
            # Clamp at the causal diagonal: for fully-masked kv tiles the block
            # index repeats, so Pallas skips the (useless) K/V DMA entirely.
            last_needed = ((qi + 1) * tq - 1) // tkv
            return (b, jnp.minimum(ki, last_needed), plane, 0, 0)
        return index_map

    kernel = functools.partial(_flash_attn_kernel, tq=tq, tkv=tkv,
                               num_heads=H, head_dim=hd,
                               approx_recip=approx_recip)
    # TODO(synk): for very large H on v7x (64 MiB VMEM) move a factor of H into
    #             the grid; pl.Buffered(3) on K/V only if xprof shows exposed DMA.
    return pl.pallas_call(
        kernel,
        out_shape=jax.ShapeDtypeStruct((B, T, d_out), qkv5.dtype),
        grid_spec=pltpu.PrefetchScalarGridSpec(
            num_scalar_prefetch=0,
            grid=grid,
            in_specs=[
                pl.BlockSpec((None, tq, None, H, hd), q_map),
                pl.BlockSpec((None, tkv, None, H, hd), kv_map(1)),
                pl.BlockSpec((None, tkv, None, H, hd), kv_map(2)),
            ],
            out_specs=pl.BlockSpec((None, tq, d_out), lambda b, qi, ki: (b, qi, 0)),
            scratch_shapes=[
                pltpu.VMEM((tq, H), jnp.float32),       # running max m
                pltpu.VMEM((tq, H), jnp.float32),       # running sum l
                pltpu.VMEM((tq, d_out), jnp.float32),   # lane-dense accumulator
            ],
        ),
        compiler_params=pltpu.CompilerParams(
            dimension_semantics=("parallel", "parallel", "arbitrary"),
            vmem_limit_bytes=_VMEM_LIMIT),
    )(qkv5, qkv5, qkv5)


# --------------------------------------------------------------------------
# Parameter preparation (one-time, hoisted out of the forward pass)
# --------------------------------------------------------------------------
def prepare_mha_params(w_qkv, w_proj, b_proj, *, num_heads, b_qkv=None,
                       compute_dtype=jnp.bfloat16):
    """w_qkv: (3*d_out, d_in) [PyTorch Linear weight]; w_proj: (d_out, d_out);
    b_proj: (d_out,); b_qkv: optional (3*d_out,) when qkv_bias=True."""
    d_out = w_proj.shape[0]
    assert d_out % num_heads == 0
    head_dim = d_out // num_heads
    scale = 1.0 / math.sqrt(head_dim)

    wqkv_t = jnp.asarray(w_qkv, jnp.float32).T                 # (d_in, 3*d_out)
    wqkv_t = wqkv_t.at[:, :d_out].multiply(scale)              # fold 1/sqrt(hd) into Q
    if b_qkv is None:
        bqkv = jnp.zeros((1, 3 * d_out), jnp.float32)          # qkv_bias=False
    else:
        bqkv = jnp.asarray(b_qkv, jnp.float32).reshape(1, 3 * d_out)
        bqkv = bqkv.at[:, :d_out].multiply(scale)
    wproj_t = jnp.asarray(w_proj, jnp.float32).T               # (d_out, d_out)
    bproj = jnp.asarray(b_proj, jnp.float32).reshape(1, d_out)

    return {
        "wqkv_t": wqkv_t.astype(compute_dtype),
        "bqkv": bqkv,                                          # biases stay f32 (added to f32 acc)
        "wproj_t": wproj_t.astype(compute_dtype),
        "bproj": bproj,
        "num_heads": num_heads,
        "head_dim": head_dim,
        "d_out": d_out,
        "compute_dtype": jnp.dtype(compute_dtype),
    }


# --------------------------------------------------------------------------
# Full module forward
# --------------------------------------------------------------------------
def multi_head_attention(x, params, *, tq=256, tkv=256):
    """x: (B, T, d_in) -> (B, T, d_out).  Matches PyTorchMultiHeadAttention in eval mode."""
    B, T, d_in = x.shape
    H = params["num_heads"]
    hd = params["head_dim"]
    d_out = params["d_out"]
    cdt = params["compute_dtype"]
    out_dtype = x.dtype

    xc = x.reshape(B * T, d_in).astype(cdt)

    # 1) QKV projection (attention scale already folded into the Q weight columns).
    qkv = _matmul_bias(xc, params["wqkv_t"], params["bqkv"], cdt)       # (B*T, 3*d_out)

    # Free row-major reshape -- no transpose, no extra HBM pass.
    qkv5 = qkv.reshape(B, T, 3, H, hd)

    # 2) Flash-style causal attention; output is already lane-dense (B, T, d_out).
    approx = cdt == jnp.dtype(jnp.bfloat16)
    ctx = _flash_attention(qkv5, num_heads=H, head_dim=hd, tq=tq, tkv=tkv,
                           approx_recip=approx)                          # (B, T, d_out)

    # 3) Output projection + bias.
    out = _matmul_bias(ctx.reshape(B * T, d_out), params["wproj_t"],
                       params["bproj"], out_dtype)                       # (B*T, d_out)
    return out.reshape(B, T, d_out)


# --------------------------------------------------------------------------
# Reference (plain JAX mirror of the PyTorch forward in eval mode)
# --------------------------------------------------------------------------
def _reference(x, w_qkv, w_proj, b_proj, num_heads):
    B, T, d_in = x.shape
    d_out = w_proj.shape[0]
    hd = d_out // num_heads
    qkv = x @ w_qkv.T
    qkv = qkv.reshape(B, T, 3, num_heads, hd).transpose(2, 0, 3, 1, 4)
    q, k, v = qkv[0], qkv[1], qkv[2]
    s = jnp.einsum("bhqd,bhkd->bhqk", q, k) / math.sqrt(hd)
    mask = jnp.tril(jnp.ones((T, T), bool))
    s = jnp.where(mask, s, -jnp.inf)
    p = jax.nn.softmax(s, axis=-1)
    ctx = jnp.einsum("bhqk,bhkd->bhqd", p, v)
    ctx = ctx.transpose(0, 2, 1, 3).reshape(B, T, d_out)
    return ctx @ w_proj.T + b_proj


if __name__ == "__main__":
    B, T, d_in, d_out, num_heads = 2, 8, 32, 32, 4

    key = jax.random.PRNGKey(0)
    kx, kw1, kw2, kb = jax.random.split(key, 4)
    x = jax.random.normal(kx, (B, T, d_in), jnp.float32)
    # PyTorch shapes: Linear(d_in, 3*d_out, bias=False), Linear(d_out, d_out, bias=True)
    w_qkv = jax.random.normal(kw1, (3 * d_out, d_in), jnp.float32) * 0.05
    w_proj = jax.random.normal(kw2, (d_out, d_out), jnp.float32) * 0.05
    b_proj = jax.random.normal(kb, (d_out,), jnp.float32) * 0.05

    ref = _reference(x, w_qkv, w_proj, b_proj, num_heads)

    # Fast path: bf16 operands, f32 accumulation (looser tolerance vs f32 reference).
    params_bf16 = prepare_mha_params(w_qkv, w_proj, b_proj, num_heads=num_heads,
                                     compute_dtype=jnp.bfloat16)
    out_bf16 = jax.block_until_ready(multi_head_attention(x, params_bf16))
    assert out_bf16.shape == (B, T, d_out)
    assert jnp.allclose(out_bf16, ref, atol=5e-2, rtol=5e-2)

    # Precision path: f32 operands throughout, exact softmax reciprocal.
    params_f32 = prepare_mha_params(w_qkv, w_proj, b_proj, num_heads=num_heads,
                                    compute_dtype=jnp.float32)
    out_f32 = jax.block_until_ready(multi_head_attention(x, params_f32))
    assert jnp.allclose(out_f32, ref, atol=5e-3, rtol=5e-3)

    print("KERNEL_OK")
</pallas_src>

<mosaic_0001>
module attributes {stable_mosaic.version = 11 : i64} {
  func.func @_matmul_bias_kernel(%arg0: i32, %arg1: i32, %arg2: i32, %arg3: memref<16x32xbf16, #tpu.memory_space<vmem>>, %arg4: memref<32x96xbf16, #tpu.memory_space<vmem>>, %arg5: memref<1x96xf32, #tpu.memory_space<vmem>>, %arg6: memref<16x96xbf16, #tpu.memory_space<vmem>>, %arg7: memref<16x96xf32, #tpu.memory_space<vmem>>) attributes {dimension_semantics = [#tpu.dimension_semantics<parallel>, #tpu.dimension_semantics<parallel>, #tpu.dimension_semantics<arbitrary>], iteration_bounds = array<i64: 1, 1, 1>, scalar_prefetch = 0 : i64, scratch_operands = 1 : i64, tpu.core_type = #tpu.core_type<tc>, window_params = [{transform_indices = @transform_0, window_bounds = array<i64: 16, 32>}, {transform_indices = @transform_1, window_bounds = array<i64: 32, 96>}, {transform_indices = @transform_2, window_bounds = array<i64: 1, 96>}, {transform_indices = @transform_3, window_bounds = array<i64: 16, 96>}]} {
    %c0_i32 = arith.constant 0 : i32
    %0 = arith.cmpi eq, %arg2, %c0_i32 : i32
    %1 = arith.extui %0 : i1 to i32
    %c0_i32_0 = arith.constant 0 : i32
    %2 = arith.cmpi ne, %1, %c0_i32_0 : i32
    scf.if %2 {
      %cst_10 = arith.constant 0.000000e+00 : f32
      %12 = vector.broadcast %cst_10 : f32 to vector<16x96xf32>
      %c0_11 = arith.constant 0 : index
      %c0_12 = arith.constant 0 : index
      %13 = vector.load %arg7[%c0_11, %c0_12] : memref<16x96xf32, #tpu.memory_space<vmem>>, vector<16x96xf32>
      tpu.vector_store %arg7[%c0_11, %c0_12], %12 {strides = array<i32>} : memref<16x96xf32, #tpu.memory_space<vmem>>, vector<16x96xf32>,
    } else {
    }
    %c0 = arith.constant 0 : index
    %c0_1 = arith.constant 0 : index
    %3 = vector.load %arg7[%c0, %c0_1] : memref<16x96xf32, #tpu.memory_space<vmem>>, vector<16x96xf32>
    %c0_2 = arith.constant 0 : index
    %c0_3 = arith.constant 0 : index
    %4 = vector.load %arg3[%c0_2, %c0_3] : memref<16x32xbf16, #tpu.memory_space<vmem>>, vector<16x32xbf16>
    %c0_4 = arith.constant 0 : index
    %c0_5 = arith.constant 0 : index
    %5 = vector.load %arg4[%c0_4, %c0_5] : memref<32x96xbf16, #tpu.memory_space<vmem>>, vector<32x96xbf16>
    %cst = arith.constant dense<0.000000e+00> : vector<16x96xf32>
    %6 = tpu.matmul %4, %5, %cst {dimension_numbers = #tpu.dot_dimension_numbers<[1], [0], [0], [1], [0, 0, 1, 1], [], []>} : vector<16x32xbf16>, vector<32x96xbf16>, vector<16x96xf32> -> vector<16x96xf32>
    %7 = arith.addf %3, %6 : vector<16x96xf32>
    %c0_6 = arith.constant 0 : index
    %c0_7 = arith.constant 0 : index
    %8 = vector.load %arg7[%c0_6, %c0_7] : memref<16x96xf32, #tpu.memory_space<vmem>>, vector<16x96xf32>
    tpu.vector_store %arg7[%c0_6, %c0_7], %7 {strides = array<i32>} : memref<16x96xf32, #tpu.memory_space<vmem>>, vector<16x96xf32>,
    %c0_i32_8 = arith.constant 0 : i32
    %9 = arith.cmpi eq, %arg2, %c0_i32_8 : i32
    %10 = arith.extui %9 : i1 to i32
    %c0_i32_9 = arith.constant 0 : i32
    %11 = arith.cmpi ne, %10, %c0_i32_9 : i32
    scf.if %11 {
      %c0_10 = arith.constant 0 : index
      %c0_11 = arith.constant 0 : index
      %12 = vector.load %arg7[%c0_10, %c0_11] : memref<16x96xf32, #tpu.memory_space<vmem>>, vector<16x96xf32>
      %c0_12 = arith.constant 0 : index
      %c0_13 = arith.constant 0 : index
      %13 = vector.load %arg5[%c0_12, %c0_13] : memref<1x96xf32, #tpu.memory_space<vmem>>, vector<1x96xf32>
      %14 = vector.broadcast %13 : vector<1x96xf32> to vector<16x96xf32>
      %15 = arith.addf %12, %14 : vector<16x96xf32>
      %16 = arith.truncf %15 : vector<16x96xf32> to vector<16x96xbf16>
      %c0_14 = arith.constant 0 : index
      %c0_15 = arith.constant 0 : index
      %17 = vector.load %arg6[%c0_14, %c0_15] : memref<16x96xbf16, #tpu.memory_space<vmem>>, vector<16x96xbf16>
      tpu.vector_store %arg6[%c0_14, %c0_15], %16 {strides = array<i32>} : memref<16x96xbf16, #tpu.memory_space<vmem>>, vector<16x96xbf16>,
    } else {
    }
    return
  }
  func.func @transform_0(%arg0: i32, %arg1: i32, %arg2: i32) -> (i32, i32) {
    %c0_i32 = arith.constant 0 : i32
    return %arg0, %arg2 : i32, i32
  }
  func.func @transform_1(%arg0: i32, %arg1: i32, %arg2: i32) -> (i32, i32) {
    %c0_i32 = arith.constant 0 : i32
    return %arg2, %arg1 : i32, i32
  }
  func.func @transform_2(%arg0: i32, %arg1: i32, %arg2: i32) -> (i32, i32) {
    %c0_i32 = arith.constant 0 : i32
    %c0_i32_0 = arith.constant 0 : i32
    return %c0_i32, %arg1 : i32, i32
  }
  func.func @transform_3(%arg0: i32, %arg1: i32, %arg2: i32) -> (i32, i32) {
    %c0_i32 = arith.constant 0 : i32
    return %arg0, %arg1 : i32, i32
  }
}

</mosaic_0001>

<llo_original>
// kernel: tpu_custom_call.1
$region0: #{tpu_custom_call.1}
  #allocation0 [shape = 'u32[]', space=smem, size = 0x4, offset = 0x4, fixed_abs, tag = 'smem constant byte address 0x4 - core index']
  #allocation1 [shape = 'u32[72,128]{1,0:T(1,128)}', space=vmem, size = 0x9000, scoped, tag = 'internal scratch']
  #allocation2 [shape = 'f32[16,96]{1,0:T(8,128)}', space=vmem, size = 0x2000, scoped, tag = 'scratch operand']
  %s0 = inlined_call_operand.hbm [shape: bf16[16,32], index: 0, kind: input, shape index: {}]
  %s1 = inlined_call_operand.hbm [shape: bf16[32,96], index: 1, kind: input, shape index: {}]
  %s2 = inlined_call_operand.vmem [shape: f32[1,96], index: 2, kind: input, shape index: {}]
  %s3 = inlined_call_operand.hbm [shape: bf16[16,96], index: 3, kind: output, shape index: {}]
  %s4 = sld [smem:[#allocation0]]
  $region38: #{tpu_custom_call.1} parent=0
    _
  %s6 = ssub.s32 1, %s4
  %s7 = scalar_select 0, %s6, %s4
  $region1: #{tpu_custom_call.1} parent=0
    #allocation3 [shape = 'u8[4096]{0}', space=vmem, size = 0x1000, scoped, tag = 'input window, operand 0, single buffered']
    #allocation4 [shape = 's32[1]{0}', space=sflag, size = 0x4, scoped, tag = 'scoped memory for tpu_custom_call.1']
    #allocation5 [shape = 's32[1]{0}', space=sflag, size = 0x4, scoped, tag = 'scoped memory for tpu_custom_call.1']
    #allocation6 [shape = 'u8[8192]{0}', space=vmem, size = 0x2000, scoped, tag = 'input window, operand 1, single buffered']
    #allocation7 [shape = 's32[1]{0}', space=sflag, size = 0x4, scoped, tag = 'scoped memory for tpu_custom_call.1']
    #allocation8 [shape = 'u8[4096]{0}', space=vmem, size = 0x1000, scoped, tag = 'output window, operand 0, single buffered']
    %8 = vsyncpa [#allocation4], 0
    %9 = vsyncpa [#allocation7], 0
    %10 = vsyncpa [#allocation5], 0
    // Predicated region
    $region2: #{tpu_custom_call.1} parent=1 // pred_check
      _
    $region3: #{tpu_custom_call.1} parent=1 // pred_check_branch
      %12 = sbr.rel (0) target = $region5
    $region4: #{tpu_custom_call.1} parent=1 // pred_region
      %14 = vsyncadd [#allocation4], 0
      %s15 = sshll.u32 %s0, 4
      %s16 = int_to_ptr.hbm [resolvable:$true] %s15
      %s17 = sshll.u32 [#allocation3], 4
      %s18 = int_to_ptr.vmem [resolvable:$true] %s17
      %23 = dma.hbm_to_vmem [thread:$0]  %s16, 128, %s18, [#allocation4], 64, 64, 4
    $region5: #{tpu_custom_call.1} parent=1 // pred_fallthru
      _
    // Predicated region
    $region6: #{tpu_custom_call.1} parent=1 // pred_check
      _
    $region7: #{tpu_custom_call.1} parent=1 // pred_check_branch
      %25 = sbr.rel (0) target = $region9
    $region8: #{tpu_custom_call.1} parent=1 // pred_region
      %27 = vsyncadd [#allocation7], 0
      %s28 = sshll.u32 %s1, 4
      %s29 = int_to_ptr.hbm [resolvable:$true] %s28
      %s30 = sshll.u32 [#allocation6], 4
      %s31 = int_to_ptr.vmem [resolvable:$true] %s30
      %36 = dma.hbm_to_vmem [thread:$0]  %s29, 256, %s31, [#allocation7], 64, 64, 4
    $region9: #{tpu_custom_call.1} parent=1 // pred_fallthru
      _
    // Predicated region
    $region10: #{tpu_custom_call.1} parent=1 // pred_check
      _
    $region11: #{tpu_custom_call.1} parent=1 // pred_check_branch
      %38 = sbr.rel (0) target = $region13
    $region12: #{tpu_custom_call.1} parent=1 // pred_region
      _
    $region13: #{tpu_custom_call.1} parent=1 // pred_fallthru
      _
    // Predicated region
    $region14: #{tpu_custom_call.1} parent=1 // pred_check
      _
    $region15: #{tpu_custom_call.1} parent=1 // pred_check_branch
      %40 = sbr.rel (0) target = $region17
    $region16: #{tpu_custom_call.1} parent=1 // pred_region
      %42 = dma.done [#allocation4], 128
    $region17: #{tpu_custom_call.1} parent=1 // pred_fallthru
      _
    // Predicated region
    $region18: #{tpu_custom_call.1} parent=1 // pred_check
      _
    $region19: #{tpu_custom_call.1} parent=1 // pred_check_branch
      %44 = sbr.rel (0) target = $region21
    $region20: #{tpu_custom_call.1} parent=1 // pred_region
      %46 = dma.done [#allocation7], 256
    $region21: #{tpu_custom_call.1} parent=1 // pred_fallthru
      _
    %p48 = scmp.eq.s32.totalorder 0, 0
    // Predicated region
    $region22: #{tpu_custom_call.1} parent=1 // pred_check
      %p49 = pneg %p48
    $region23: #{tpu_custom_call.1} parent=1 // pred_check_branch
      %51 = sbr.rel (%p49) target = $region25
    $region24: #{tpu_custom_call.1} parent=1 // pred_region
      %vm52 = vcmask 785408
      %53 = vst.msk [vmem:[#allocation2] sm:$0xff] %vm52, 0.0
      %54 = vst.msk [vmem:[#allocation2 + $0x8] sm:$0xff] %vm52, 0.0
    $region25: #{tpu_custom_call.1} parent=1 // pred_fallthru
      _
    %v55 = vld [vmem:[#allocation2] sm:$0xff]
    %v56 = vld [vmem:[#allocation2 + $0x8] sm:$0xff]
    %v57 = vld [vmem:[#allocation3] sm:$0xf]
    %v58 = vld [vmem:[#allocation3 + $0x4] sm:$0xf]
    %v59 = vld [vmem:[#allocation6] sm:$0xf]
    %v60 = vld [vmem:[#allocation6 + $0x4] sm:$0xf]
    %v61 = vld [vmem:[#allocation6 + $0x8] sm:$0xf]
    %v62 = vld [vmem:[#allocation6 + $0xc] sm:$0xf]
    %v65 = vunpack.c.l.b16 %v57
    %v66 = vunpack.c.l.b16 %v58
    %v67 = vpack.c.b16 %v66, %v65
    %v72 = vunpack.c.l.b16 %v59
    %v73 = vunpack.c.l.b16 %v60
    %v74 = vunpack.c.l.b16 %v61
    %v75 = vunpack.c.l.b16 %v62
    %v76 = vpack.c.b16 %v73, %v72
    %v77 = vpack.c.b16 %v75, %v74
    %vm80 = vcmask 261120
    %v82 = vsel %vm80, %v67, 0
    %84 = vmatpush.bf16.msra.mxu0 0
    %85 = vmatpush.bf16.msra.mxu0 0
    %86 = vmatpush.bf16.msra.mxu0 0
    %87 = vmatpush.bf16.msra.mxu0 0
    %88 = vmatpush.bf16.msra.mxu0 0
    %89 = vmatpush.bf16.msra.mxu0 0
    %90 = vmatpush.bf16.msra.mxu0 %v77
    %91 = vmatpush.bf16.msra.mxu0 %v76
    %92 = vmatmul.bf16.gmra.mxu0 %v82
    %v93 = vpop.f32.mrf.mxu0
    %v94 = vadd.f32 0.0, %v93
    %v95 = vpop.f32.mrf.mxu0
    %v96 = vadd.f32 0.0, %v95
    %97 = vdwg.mxu0
    %v98 = vadd.f32 %v55, %v94
    %v99 = vadd.f32 %v56, %v96
    %vm100 = vcmask 785408
    %101 = vst.msk [vmem:[#allocation2] sm:$0xff] %vm100, %v98
    %102 = vst.msk [vmem:[#allocation2 + $0x8] sm:$0xff] %vm100, %v99
    // Predicated region
    $region26: #{tpu_custom_call.1} parent=1 // pred_check
      %p103 = pneg %p48
    $region27: #{tpu_custom_call.1} parent=1 // pred_check_branch
      %105 = sbr.rel (%p103) target = $region29
    $region28: #{tpu_custom_call.1} parent=1 // pred_region
      %v106 = vld [vmem:[#allocation2] sm:$0xff]
      %v107 = vld [vmem:[#allocation2 + $0x8] sm:$0xff]
      %v108 = vld [vmem:[%s2] sm:$0x1]
      %v110 = vperm.slane %v108, 0
      %v112 = vadd.f32 %v106, %v110
      %v113 = vadd.f32 %v107, %v110
      %v114 = vpack.c.bf16 %v112, %v112
      %v115 = vpack.c.bf16 %v113, %v113
      %vm116 = vcmask 781312
      %117 = vst.msk [vmem:[#allocation8] sm:$0xf] %vm116, %v114
      %118 = vst.msk [vmem:[#allocation8 + $0x4] sm:$0xf] %vm116, %v115
    $region29: #{tpu_custom_call.1} parent=1 // pred_fallthru
      _
    // Predicated region
    $region30: #{tpu_custom_call.1} parent=1 // pred_check
      _
    $region31: #{tpu_custom_call.1} parent=1 // pred_check_branch
      %120 = sbr.rel (0) target = $region33
    $region32: #{tpu_custom_call.1} parent=1 // pred_region
      %122 = vsyncadd [#allocation5], 0
      %s123 = sshll.u32 [#allocation8], 4
      %s124 = int_to_ptr.vmem [resolvable:$true] %s123
      %s125 = sshll.u32 %s3, 4
      %s126 = int_to_ptr.hbm [resolvable:$true] %s125
      %131 = dma.vmem_to_hbm [thread:$0]  %s124, 128, %s126, [#allocation5], 64, 64, 4
    $region33: #{tpu_custom_call.1} parent=1 // pred_fallthru
      _
    // Predicated region
    $region34: #{tpu_custom_call.1} parent=1 // pred_check
      _
    $region35: #{tpu_custom_call.1} parent=1 // pred_check_branch
      %133 = sbr.rel (0) target = $region37
    $region36: #{tpu_custom_call.1} parent=1 // pred_region
      %135 = dma.done [#allocation5], 128
    $region37: #{tpu_custom_call.1} parent=1 // pred_fallthru
      _
    %136 = vsyncpa [#allocation4], 1
    %137 = vsyncpa [#allocation7], 1
    %138 = vsyncpa [#allocation5], 1

</llo_original>
